<compile_context>
chip_gen: v7x
topology: tpu7x:2x2x1
jax: 0.10.0
libtpu: 0.0.40
codegen_flags: <defaults>
</compile_context>

<pallas_src>
from functools import partial

import jax
import jax.numpy as jnp
from jax.experimental import pallas as pl
from jax.experimental.pallas import tpu as pltpu


def _round_up(n, m):
    return pl.cdiv(n, m) * m


def _mm_embed_maxpool_kernel(x_ref, w_ref, b_ref, o_ref, *, num_modes, c_pad):
    """x_ref: (TB, D), w_ref: (D, M*c_pad), b_ref: (1, M*c_pad), o_ref: (TB, c_pad)."""
    x = x_ref[...]                                                     # (TB, D)
    # Single lane-packed MXU matmul for all classes x modes, bias folded in once.
    y = jnp.dot(x, w_ref[...], preferred_element_type=jnp.float32) + b_ref[...]
    # Mode reduction: static 128-aligned lane slices + elementwise max (VPU).
    acc = y[:, 0:c_pad]
    for m in range(1, num_modes):
        acc = jnp.maximum(acc, y[:, m * c_pad:(m + 1) * c_pad])
    o_ref[...] = acc.astype(o_ref.dtype)


def prepare_params(weights, biases, dtype=jnp.float32):
    """One-time parameter re-layout (hoist out of the per-call hot path).

    Args:
      weights: (C, M, D) stacked nn.Linear weights (out_features, in_features) per class.
      biases:  (C, M)    stacked nn.Linear biases per class.
    Returns:
      w_packed: (D, M*C_pad) with W[d, m*C_pad + c] = weights[c, m, d]
      b_packed: (1, M*C_pad) with b[0, m*C_pad + c] = biases[c, m]
      (padded class lanes are zero; they are sliced off after the kernel)
    """
    C, M, D = weights.shape
    assert biases.shape == (C, M)
    c_pad = _round_up(C, 128)                       # lane-dense class axis
    w = jnp.transpose(weights, (2, 1, 0))           # (D, M, C)
    w = jnp.pad(w, ((0, 0), (0, 0), (0, c_pad - C)))
    w_packed = w.reshape(D, M * c_pad).astype(dtype)
    b = jnp.transpose(biases, (1, 0))               # (M, C)
    b = jnp.pad(b, ((0, 0), (0, c_pad - C)))
    b_packed = b.reshape(1, M * c_pad).astype(dtype)
    return w_packed, b_packed


@partial(jax.jit, static_argnames=("num_modes", "num_classes", "block_b"))
def multi_mode_embedding_maxpooling(x, w_packed, b_packed, *, num_modes,
                                    num_classes, block_b=128):
    """Forward pass.

    Args:
      x:        (B, D) float32
      w_packed: (D, M*C_pad) from prepare_params
      b_packed: (1, M*C_pad) from prepare_params
    Returns:
      (B, num_classes) float32 logits (max over modes).
    """
    B, D = x.shape
    D2, MC = w_packed.shape
    assert D == D2 and MC % num_modes == 0
    c_pad = MC // num_modes
    assert c_pad % 128 == 0 and c_pad >= num_classes

    # Batch tiling: TB multiple of 8 (f32 sublane); pad B so the grid divides evenly.
    tb = min(block_b, _round_up(B, 8))
    b_pad = _round_up(B, tb)
    if b_pad != B:
        x = jnp.pad(x, ((0, b_pad - B), (0, 0)))

    kernel = partial(_mm_embed_maxpool_kernel, num_modes=num_modes, c_pad=c_pad)

    out = pl.pallas_call(
        kernel,
        out_shape=jax.ShapeDtypeStruct((b_pad, c_pad), jnp.float32),
        grid=(b_pad // tb,),
        in_specs=[
            pl.BlockSpec((tb, D), lambda i: (i, 0)),     # x tile, pipelined over batch
            pl.BlockSpec((D, MC), lambda i: (0, 0)),     # weights resident in VMEM
            pl.BlockSpec((1, MC), lambda i: (0, 0)),     # bias resident in VMEM
        ],
        out_specs=pl.BlockSpec((tb, c_pad), lambda i: (i, 0)),  # lane-dense store
        compiler_params=pltpu.CompilerParams(
            dimension_semantics=("parallel",),
        ),
    )(x, w_packed, b_packed)

    # Trim batch padding and the lane padding on the class axis.
    return out[:B, :num_classes]


def _reference(x, weights, biases):
    # Plain-JAX reference of the PyTorch forward.
    # y[b, c, m] = sum_d x[b, d] * weights[c, m, d] + biases[c, m]
    y = jnp.einsum("bd,cmd->bcm", x, weights) + biases[None, :, :]
    return jnp.max(y, axis=-1)  # (B, C)


def _init_params(key, num_classes, num_modes, input_size):
    """Deterministic synthetic init mirroring the PyTorch module's __init__:
    xavier_normal_ weights, default-Linear uniform biases."""
    kw, kb = jax.random.split(key)
    xavier_std = (2.0 / (input_size + num_modes)) ** 0.5
    weights = xavier_std * jax.random.normal(
        kw, (num_classes, num_modes, input_size), dtype=jnp.float32
    )
    bound = 1.0 / (input_size ** 0.5)
    biases = jax.random.uniform(
        kb, (num_classes, num_modes), minval=-bound, maxval=bound, dtype=jnp.float32
    )
    return weights, biases


if __name__ == "__main__":
    B, D, M, C = 8, 32, 4, 10  # batch, input_size, num_modes, num_classes

    key = jax.random.PRNGKey(0)
    kx, kp = jax.random.split(key)
    x = jax.random.normal(kx, (B, D), dtype=jnp.float32)
    weights, biases = _init_params(kp, C, M, D)

    # Parameter re-layout done ONCE (would live at parameter-load time).
    # TODO(synk): for bf16 deployments, pass dtype=jnp.bfloat16 here and relax
    # the tolerance below (~1e-3); accumulation stays f32 inside the kernel.
    w_packed, b_packed = prepare_params(weights, biases)

    out = multi_mode_embedding_maxpooling(
        x, w_packed, b_packed, num_modes=M, num_classes=C
    )
    out = jax.block_until_ready(out)

    ref = _reference(x, weights, biases)
    assert out.shape == (B, C), out.shape
    assert jnp.allclose(out, ref, atol=1e-5, rtol=1e-5), (
        "mismatch", float(jnp.max(jnp.abs(out - ref)))
    )
    print("KERNEL_OK")
</pallas_src>

<mosaic_0001>
module attributes {stable_mosaic.version = 11 : i64} {
  func.func @_mm_embed_maxpool_kernel(%arg0: i32, %arg1: memref<8x32xf32, #tpu.memory_space<vmem>>, %arg2: memref<32x512xf32, #tpu.memory_space<vmem>>, %arg3: memref<1x512xf32, #tpu.memory_space<vmem>>, %arg4: memref<8x128xf32, #tpu.memory_space<vmem>>) attributes {dimension_semantics = [#tpu.dimension_semantics<parallel>], iteration_bounds = array<i64: 1>, scalar_prefetch = 0 : i64, scratch_operands = 0 : i64, tpu.core_type = #tpu.core_type<tc>, window_params = [{transform_indices = @transform_0, window_bounds = array<i64: 8, 32>}, {pipeline_mode = #tpu.pipeline_mode<synchronous>, transform_indices = @transform_1, window_bounds = array<i64: 32, 512>}, {pipeline_mode = #tpu.pipeline_mode<synchronous>, transform_indices = @transform_2, window_bounds = array<i64: 1, 512>}, {transform_indices = @transform_3, window_bounds = array<i64: 8, 128>}]} {
    %c0 = arith.constant 0 : index
    %c0_0 = arith.constant 0 : index
    %0 = vector.load %arg1[%c0, %c0_0] : memref<8x32xf32, #tpu.memory_space<vmem>>, vector<8x32xf32>
    %c0_1 = arith.constant 0 : index
    %c0_2 = arith.constant 0 : index
    %1 = vector.load %arg2[%c0_1, %c0_2] : memref<32x512xf32, #tpu.memory_space<vmem>>, vector<32x512xf32>
    %cst = arith.constant dense<0.000000e+00> : vector<8x512xf32>
    %2 = tpu.matmul %0, %1, %cst {dimension_numbers = #tpu.dot_dimension_numbers<[1], [0], [0], [1], [0, 0, 1, 1], [], []>} : vector<8x32xf32>, vector<32x512xf32>, vector<8x512xf32> -> vector<8x512xf32>
    %c0_3 = arith.constant 0 : index
    %c0_4 = arith.constant 0 : index
    %3 = vector.load %arg3[%c0_3, %c0_4] : memref<1x512xf32, #tpu.memory_space<vmem>>, vector<1x512xf32>
    %4 = vector.broadcast %3 : vector<1x512xf32> to vector<8x512xf32>
    %5 = arith.addf %2, %4 : vector<8x512xf32>
    %6 = vector.extract_strided_slice %5 {offsets = [0, 0], sizes = [8, 128], strides = [1, 1]} : vector<8x512xf32> to vector<8x128xf32>
    %7 = vector.extract_strided_slice %5 {offsets = [0, 128], sizes = [8, 128], strides = [1, 1]} : vector<8x512xf32> to vector<8x128xf32>
    %8 = arith.maximumf %6, %7 : vector<8x128xf32>
    %9 = vector.extract_strided_slice %5 {offsets = [0, 256], sizes = [8, 128], strides = [1, 1]} : vector<8x512xf32> to vector<8x128xf32>
    %10 = arith.maximumf %8, %9 : vector<8x128xf32>
    %11 = vector.extract_strided_slice %5 {offsets = [0, 384], sizes = [8, 128], strides = [1, 1]} : vector<8x512xf32> to vector<8x128xf32>
    %12 = arith.maximumf %10, %11 : vector<8x128xf32>
    %c0_5 = arith.constant 0 : index
    %c0_6 = arith.constant 0 : index
    %13 = vector.load %arg4[%c0_5, %c0_6] : memref<8x128xf32, #tpu.memory_space<vmem>>, vector<8x128xf32>
    tpu.vector_store %arg4[%c0_5, %c0_6], %12 {strides = array<i32>} : memref<8x128xf32, #tpu.memory_space<vmem>>, vector<8x128xf32>,
    return
  }
  func.func @transform_0(%arg0: i32) -> (i32, i32) {
    %c0_i32 = arith.constant 0 : i32
    %c0_i32_0 = arith.constant 0 : i32
    return %arg0, %c0_i32 : i32, i32
  }
  func.func @transform_1(%arg0: i32) -> (i32, i32) {
    %c0_i32 = arith.constant 0 : i32
    %c0_i32_0 = arith.constant 0 : i32
    %c0_i32_1 = arith.constant 0 : i32
    return %c0_i32, %c0_i32_0 : i32, i32
  }
  func.func @transform_2(%arg0: i32) -> (i32, i32) {
    %c0_i32 = arith.constant 0 : i32
    %c0_i32_0 = arith.constant 0 : i32
    %c0_i32_1 = arith.constant 0 : i32
    return %c0_i32, %c0_i32_0 : i32, i32
  }
  func.func @transform_3(%arg0: i32) -> (i32, i32) {
    %c0_i32 = arith.constant 0 : i32
    %c0_i32_0 = arith.constant 0 : i32
    return %arg0, %c0_i32 : i32, i32
  }
}

</mosaic_0001>

<llo_original>
// kernel: multi_mode_embedding_maxpooling.1
$region0: #{multi_mode_embedding_maxpooling.1}
  #allocation0 [shape = 'u32[]', space=smem, size = 0x4, offset = 0x4, fixed_abs, tag = 'smem constant byte address 0x4 - core index']
  #allocation1 [shape = 'u32[144,128]{1,0:T(1,128)}', space=vmem, size = 0x12000, scoped, tag = 'internal scratch']
  %s0 = inlined_call_operand.hbm [shape: f32[8,32], index: 0, kind: input, shape index: {}]
  %s1 = inlined_call_operand.hbm [shape: f32[32,512], index: 1, kind: input, shape index: {}]
  %s2 = inlined_call_operand.vmem [shape: f32[1,512], index: 2, kind: input, shape index: {}]
  %s3 = inlined_call_operand.hbm [shape: f32[8,128], index: 3, kind: output, shape index: {}]
  %s4 = sld [smem:[#allocation0]]
  $region30: #{multi_mode_embedding_maxpooling.1} parent=0
    _
  %s6 = ssub.s32 1, %s4
  %s7 = scalar_select 0, %s6, %s4
  $region1: #{multi_mode_embedding_maxpooling.1} parent=0
    #allocation2 [shape = 'u8[4096]{0}', space=vmem, size = 0x1000, scoped, tag = 'input window, operand 0, single buffered']
    #allocation3 [shape = 's32[1]{0}', space=sflag, size = 0x4, scoped, tag = 'scoped memory for multi_mode_embedding_maxpooling.1']
    #allocation4 [shape = 's32[1]{0}', space=sflag, size = 0x4, scoped, tag = 'scoped memory for multi_mode_embedding_maxpooling.1']
    #allocation5 [shape = 'u8[65536]{0}', space=vmem, size = 0x10000, scoped, tag = 'input window, operand 1, single buffered']
    #allocation6 [shape = 's32[1]{0}', space=sflag, size = 0x4, scoped, tag = 'scoped memory for multi_mode_embedding_maxpooling.1']
    #allocation7 [shape = 'u8[4096]{0}', space=vmem, size = 0x1000, scoped, tag = 'output window, operand 0, single buffered']
    %8 = vsyncpa [#allocation3], 0
    %9 = vsyncpa [#allocation6], 0
    %10 = vsyncpa [#allocation4], 0
    // Predicated region
    $region2: #{multi_mode_embedding_maxpooling.1} parent=1 // pred_check
      _
    $region3: #{multi_mode_embedding_maxpooling.1} parent=1 // pred_check_branch
      %12 = sbr.rel (0) target = $region5
    $region4: #{multi_mode_embedding_maxpooling.1} parent=1 // pred_region
      %s14 = ssub.s32 128, 128
      %15 = vsyncadd [#allocation3], %s14
      %s17 = sshll.u32 [#allocation2], 4
      %s18 = int_to_ptr.vmem [resolvable:$true] %s17
      %20 = dma.hbm_to_vmem [thread:$0]  %s0, 128, %s18, [#allocation3]
    $region5: #{multi_mode_embedding_maxpooling.1} parent=1 // pred_fallthru
      _
    // Predicated region
    $region6: #{multi_mode_embedding_maxpooling.1} parent=1 // pred_check
      _
    $region7: #{multi_mode_embedding_maxpooling.1} parent=1 // pred_check_branch
      %22 = sbr.rel (0) target = $region9
    $region8: #{multi_mode_embedding_maxpooling.1} parent=1 // pred_region
      %s24 = ssub.s32 2048, 2048
      %25 = vsyncadd [#allocation6], %s24
      %s26 = sshll.u32 [#allocation5], 4
      %s27 = int_to_ptr.vmem [resolvable:$true] %s26
      %32 = dma.hbm_to_vmem [thread:$0]  %s1, 2048, %s27, [#allocation6], 512, 512, 32
    $region9: #{multi_mode_embedding_maxpooling.1} parent=1 // pred_fallthru
      _
    // Predicated region
    $region10: #{multi_mode_embedding_maxpooling.1} parent=1 // pred_check
      _
    $region11: #{multi_mode_embedding_maxpooling.1} parent=1 // pred_check_branch
      %34 = sbr.rel (0) target = $region13
    $region12: #{multi_mode_embedding_maxpooling.1} parent=1 // pred_region
      _
    $region13: #{multi_mode_embedding_maxpooling.1} parent=1 // pred_fallthru
      _
    // Predicated region
    $region14: #{multi_mode_embedding_maxpooling.1} parent=1 // pred_check
      _
    $region15: #{multi_mode_embedding_maxpooling.1} parent=1 // pred_check_branch
      %36 = sbr.rel (0) target = $region17
    $region16: #{multi_mode_embedding_maxpooling.1} parent=1 // pred_region
      %37 = dma.done [#allocation3], 128
    $region17: #{multi_mode_embedding_maxpooling.1} parent=1 // pred_fallthru
      _
    // Predicated region
    $region18: #{multi_mode_embedding_maxpooling.1} parent=1 // pred_check
      _
    $region19: #{multi_mode_embedding_maxpooling.1} parent=1 // pred_check_branch
      %39 = sbr.rel (0) target = $region21
    $region20: #{multi_mode_embedding_maxpooling.1} parent=1 // pred_region
      %40 = dma.done [#allocation6], 2048
    $region21: #{multi_mode_embedding_maxpooling.1} parent=1 // pred_fallthru
      _
    %v41 = vld [vmem:[#allocation2] sm:$0xff]
    %v42 = vld [vmem:[#allocation5] sm:$0xff]
    %v43 = vld [vmem:[#allocation5 + $0x8] sm:$0xff]
    %v44 = vld [vmem:[#allocation5 + $0x10] sm:$0xff]
    %v45 = vld [vmem:[#allocation5 + $0x18] sm:$0xff]
    %v46 = vld [vmem:[#allocation5 + $0x20] sm:$0xff]
    %v47 = vld [vmem:[#allocation5 + $0x28] sm:$0xff]
    %v48 = vld [vmem:[#allocation5 + $0x30] sm:$0xff]
    %v49 = vld [vmem:[#allocation5 + $0x38] sm:$0xff]
    %v50 = vld [vmem:[#allocation5 + $0x40] sm:$0xff]
    %v51 = vld [vmem:[#allocation5 + $0x48] sm:$0xff]
    %v52 = vld [vmem:[#allocation5 + $0x50] sm:$0xff]
    %v53 = vld [vmem:[#allocation5 + $0x58] sm:$0xff]
    %v54 = vld [vmem:[#allocation5 + $0x60] sm:$0xff]
    %v55 = vld [vmem:[#allocation5 + $0x68] sm:$0xff]
    %v56 = vld [vmem:[#allocation5 + $0x70] sm:$0xff]
    %v57 = vld [vmem:[#allocation5 + $0x78] sm:$0xff]
    %v58 = vld [vmem:[%s2] sm:$0xf]
    %v60 = vlaneseq
    %v61 = vshrl.u32 %v60, 7
    %v62 = vsub.s32 0, %v61
    %v63 = vrot.slane %v58, %v62
    %v64 = vlaneseq
    %v65 = vshrl.u32 %v64, 7
    %v66 = vsub.s32 1, %v65
    %v67 = vrot.slane %v58, %v66
    %v68 = vlaneseq
    %v69 = vshrl.u32 %v68, 7
    %v70 = vsub.s32 2, %v69
    %v71 = vrot.slane %v58, %v70
    %v72 = vlaneseq
    %v73 = vshrl.u32 %v72, 7
    %v74 = vsub.s32 3, %v73
    %v75 = vrot.slane %v58, %v74
    %vm80 = vcmask 261120
    %v82 = vsel %vm80, %v41, 0
    %84 = vmatprep.subr.mxu0 %v43
    %85 = vmatpush1.msra.mxu0 %v42
    %86 = vmatprep.subr.mxu0 %v47
    %87 = vmatpush1.msra.mxu0 %v46
    %88 = vmatprep.subr.mxu0 %v51
    %89 = vmatpush1.msra.mxu0 %v50
    %90 = vmatprep.subr.mxu0 %v55
    %91 = vmatpush1.msra.mxu0 %v54
    %92 = vmatprep.subr.mxu0 0.0
    %93 = vmatpush1.msra.mxu0 0.0
    %94 = vmatprep.subr.mxu0 0.0
    %95 = vmatpush1.msra.mxu0 0.0
    %96 = vmatprep.subr.mxu0 0.0
    %97 = vmatpush1.msra.mxu0 0.0
    %98 = vmatprep.subr.mxu0 0.0
    %99 = vmatpush1.msra.mxu0 0.0
    %100 = vmatprep.subr.mxu0 0.0
    %101 = vmatpush1.msra.mxu0 0.0
    %102 = vmatprep.subr.mxu0 0.0
    %103 = vmatpush1.msra.mxu0 0.0
    %104 = vmatprep.subr.mxu0 0.0
    %105 = vmatpush1.msra.mxu0 0.0
    %106 = vmatprep.subr.mxu0 0.0
    %107 = vmatpush1.msra.mxu0 0.0
    %108 = vmatprep.subr.mxu0 0.0
    %109 = vmatpush1.msra.mxu0 0.0
    %110 = vmatprep.subr.mxu0 0.0
    %111 = vmatpush1.msra.mxu0 0.0
    %112 = vmatprep.subr.mxu0 0.0
    %113 = vmatpush1.msra.mxu0 0.0
    %114 = vmatprep.subr.mxu0 0.0
    %115 = vmatpush1.msra.mxu0 0.0
    %116 = vmatprep.subr.mxu0 0.0
    %117 = vmatpush1.msra.mxu0 0.0
    %118 = vmatprep.subr.mxu0 0.0
    %119 = vmatpush1.msra.mxu0 0.0
    %120 = vmatprep.subr.mxu0 0.0
    %121 = vmatpush1.msra.mxu0 0.0
    %122 = vmatprep.subr.mxu0 0.0
    %123 = vmatpush1.msra.mxu0 0.0
    %124 = vmatprep.subr.mxu0 0.0
    %125 = vmatpush1.msra.mxu0 0.0
    %126 = vmatprep.subr.mxu0 0.0
    %127 = vmatpush1.msra.mxu0 0.0
    %128 = vmatprep.subr.mxu0 0.0
    %129 = vmatpush1.msra.mxu0 0.0
    %130 = vmatprep.subr.mxu0 0.0
    %131 = vmatpush1.msra.mxu0 0.0
    %132 = vmatprep.subr.mxu0 0.0
    %133 = vmatpush1.msra.mxu0 0.0
    %134 = vmatprep.subr.mxu0 0.0
    %135 = vmatpush1.msra.mxu0 0.0
    %136 = vmatprep.subr.mxu0 0.0
    %137 = vmatpush1.msra.mxu0 0.0
    %138 = vmatprep.subr.mxu0 0.0
    %139 = vmatpush1.msra.mxu0 0.0
    %140 = vmatprep.subr.mxu0 0.0
    %141 = vmatpush1.msra.mxu0 0.0
    %142 = vmatprep.subr.mxu0 0.0
    %143 = vmatpush1.msra.mxu0 0.0
    %144 = vmatprep.subr.mxu0 0.0
    %145 = vmatpush1.msra.mxu0 0.0
    %146 = vmatprep.subr.mxu0 0.0
    %147 = vmatpush1.msra.mxu0 0.0
    %148 = vmatprep.mubr.f32.mxu0 0.0
    %149 = vmatmul.mubr.f32.gmra.mrb[0].mxu0 %v82
    %v150 = vpop.f32.mrb[0].mxu0
    %v151 = vadd.f32 %v63, %v150
    %v152 = vpop.f32.mrb[0].mxu0
    %v153 = vadd.f32 %v67, %v152
    %154 = vdwg.mxu0
    %155 = vmatprep.subr.mxu0 %v45
    %156 = vmatpush1.msra.mxu0 %v44
    %157 = vmatprep.subr.mxu0 %v49
    %158 = vmatpush1.msra.mxu0 %v48
    %159 = vmatprep.subr.mxu0 %v53
    %160 = vmatpush1.msra.mxu0 %v52
    %161 = vmatprep.subr.mxu0 %v57
    %162 = vmatpush1.msra.mxu0 %v56
    %163 = vmatprep.subr.mxu0 0.0
    %164 = vmatpush1.msra.mxu0 0.0
    %165 = vmatprep.subr.mxu0 0.0
    %166 = vmatpush1.msra.mxu0 0.0
    %167 = vmatprep.subr.mxu0 0.0
    %168 = vmatpush1.msra.mxu0 0.0
    %169 = vmatprep.subr.mxu0 0.0
    %170 = vmatpush1.msra.mxu0 0.0
    %171 = vmatprep.subr.mxu0 0.0
    %172 = vmatpush1.msra.mxu0 0.0
    %173 = vmatprep.subr.mxu0 0.0
    %174 = vmatpush1.msra.mxu0 0.0
    %175 = vmatprep.subr.mxu0 0.0
    %176 = vmatpush1.msra.mxu0 0.0
    %177 = vmatprep.subr.mxu0 0.0
    %178 = vmatpush1.msra.mxu0 0.0
    %179 = vmatprep.subr.mxu0 0.0
    %180 = vmatpush1.msra.mxu0 0.0
    %181 = vmatprep.subr.mxu0 0.0
    %182 = vmatpush1.msra.mxu0 0.0
    %183 = vmatprep.subr.mxu0 0.0
    %184 = vmatpush1.msra.mxu0 0.0
    %185 = vmatprep.subr.mxu0 0.0
    %186 = vmatpush1.msra.mxu0 0.0
    %187 = vmatprep.subr.mxu0 0.0
    %188 = vmatpush1.msra.mxu0 0.0
    %189 = vmatprep.subr.mxu0 0.0
    %190 = vmatpush1.msra.mxu0 0.0
    %191 = vmatprep.subr.mxu0 0.0
    %192 = vmatpush1.msra.mxu0 0.0
    %193 = vmatprep.subr.mxu0 0.0
    %194 = vmatpush1.msra.mxu0 0.0
    %195 = vmatprep.subr.mxu0 0.0
    %196 = vmatpush1.msra.mxu0 0.0
    %197 = vmatprep.subr.mxu0 0.0
    %198 = vmatpush1.msra.mxu0 0.0
    %199 = vmatprep.subr.mxu0 0.0
    %200 = vmatpush1.msra.mxu0 0.0
    %201 = vmatprep.subr.mxu0 0.0
    %202 = vmatpush1.msra.mxu0 0.0
    %203 = vmatprep.subr.mxu0 0.0
    %204 = vmatpush1.msra.mxu0 0.0
    %205 = vmatprep.subr.mxu0 0.0
    %206 = vmatpush1.msra.mxu0 0.0
    %207 = vmatprep.subr.mxu0 0.0
    %208 = vmatpush1.msra.mxu0 0.0
    %209 = vmatprep.subr.mxu0 0.0
    %210 = vmatpush1.msra.mxu0 0.0
    %211 = vmatprep.subr.mxu0 0.0
    %212 = vmatpush1.msra.mxu0 0.0
    %213 = vmatprep.subr.mxu0 0.0
    %214 = vmatpush1.msra.mxu0 0.0
    %215 = vmatprep.subr.mxu0 0.0
    %216 = vmatpush1.msra.mxu0 0.0
    %217 = vmatprep.subr.mxu0 0.0
    %218 = vmatpush1.msra.mxu0 0.0
    %219 = vmatprep.mubr.f32.mxu0 0.0
    %220 = vmatmul.mubr.f32.gmra.mrb[0].mxu0 %v82
    %v221 = vpop.f32.mrb[0].mxu0
    %v222 = vadd.f32 %v71, %v221
    %v223 = vpop.f32.mrb[0].mxu0
    %v224 = vadd.f32 %v75, %v223
    %225 = vdwg.mxu0
    %v226 = vmax.f32 %v151, %v153
    %v227 = vmax.f32 %v226, %v222
    %v228 = vmax.f32 %v227, %v224
    %229 = vst [vmem:[#allocation7] sm:$0xff] %v228
    // Predicated region
    $region22: #{multi_mode_embedding_maxpooling.1} parent=1 // pred_check
      _
    $region23: #{multi_mode_embedding_maxpooling.1} parent=1 // pred_check_branch
      %231 = sbr.rel (0) target = $region25
    $region24: #{multi_mode_embedding_maxpooling.1} parent=1 // pred_region
      %s233 = ssub.s32 128, 128
      %234 = vsyncadd [#allocation4], %s233
      %s236 = sshll.u32 [#allocation7], 4
      %s237 = int_to_ptr.vmem [resolvable:$true] %s236
      %239 = dma.vmem_to_hbm [thread:$0]  %s237, 128, %s3, [#allocation4]
    $region25: #{multi_mode_embedding_maxpooling.1} parent=1 // pred_fallthru
      _
    // Predicated region
    $region26: #{multi_mode_embedding_maxpooling.1} parent=1 // pred_check
      _
    $region27: #{multi_mode_embedding_maxpooling.1} parent=1 // pred_check_branch
      %241 = sbr.rel (0) target = $region29
    $region28: #{multi_mode_embedding_maxpooling.1} parent=1 // pred_region
      %242 = dma.done [#allocation4], 128
    $region29: #{multi_mode_embedding_maxpooling.1} parent=1 // pred_fallthru
      _
    %243 = vsyncpa [#allocation3], 1
    %244 = vsyncpa [#allocation6], 1
    %245 = vsyncpa [#allocation4], 1

</llo_original>
